<compile_context>
chip_gen: v7x
topology: tpu7x:2x2x1
jax: 0.10.0
libtpu: 0.0.40
codegen_flags: <defaults>
</compile_context>

<pallas_src>
import functools

import numpy as np
import jax
import jax.numpy as jnp
from jax import lax
from jax.experimental import pallas as pl
from jax.experimental.pallas import tpu as pltpu

_LANE = 128


def _round_up(x: int, m: int) -> int:
    return (x + m - 1) // m * m


def _cdiv(x: int, m: int) -> int:
    return (x + m - 1) // m


def _make_rosenbrock_kernel(n1: int, n2: int, a: float, b: float):
    R = n2 * (n1 - 1)  # number of "tail" feature rows

    def kernel(xt_ref, out_ref):
        # xt_ref: (D, TILE_B) -- batch on the 128-lane axis (lane-dense),
        # features on sublanes.  The "i vs i+1" shift is a sublane offset and
        # the double reduction a small cross-sublane sum.
        xt = xt_ref[...].astype(jnp.float32)
        y = xt[0:1, :]                                   # (1, TILE_B)
        if R >= 2:
            tail = xt[1:, :]                             # (R, TILE_B)
            cur = tail[:-1, :]
            d = tail[1:, :] - cur * cur                  # sublane-offset shift
            dd = d * d                                   # (R-1, TILE_B)
            # Group-boundary mask built in-kernel (no captured array consts):
            # pair k is valid iff it does not straddle a boundary of the
            # (n2, n1-1) reshape, i.e. k % (n1-1) != n1-2.
            k = lax.broadcasted_iota(jnp.int32, dd.shape, 0)
            keep = (k % (n1 - 1)) != (n1 - 2)
            s = jnp.sum(jnp.where(keep, dd, 0.0), axis=0, keepdims=True)
        else:
            s = jnp.zeros_like(y)
        ym1 = y - 1.0
        out_ref[...] = (-a * ym1 * ym1 - b * s).astype(out_ref.dtype)

    return kernel


def rosenbrock_forward(x, n1: int, n2: int, a: float = 1.0 / 20.0, b: float = 5.0,
                       *, feature_major: bool = False, max_tile_b=None):
    """Pallas implementation of Rosenbrock.forward.

    If `feature_major=True`, x must already be laid out as (D, B) (feature-major);
    this skips the wrapper transpose (one full HBM read+write) entirely.
    """
    if x.ndim > 2:
        # TODO(synk): the PyTorch 3-D branch computes and DISCARDS the -b*sum term
        # (orphaned statement); faithfully only the assigned term is returned.
        y = x[:, :, 0]
        return -a * (y - 1.0) ** 2

    D_expected = n2 * (n1 - 1) + 1

    if feature_major:
        assert x.ndim == 2, "feature_major inputs must be 2-D (D, B)"
        xt = x
        D, B = xt.shape
        dim1 = True
    else:
        dim1 = x.ndim > 1
        xb = x if dim1 else x[None, :]                   # (B, D)
        B, D = xb.shape
        # Single layout-plumbing copy; avoid it by passing feature_major data.
        xt = xb.T                                        # (D, B)
    assert D == D_expected, "feature dim must be n2*(n1-1)+1"

    R = n2 * (n1 - 1)
    itemsize = int(jnp.dtype(xt.dtype).itemsize)
    sub = max(1, 32 // itemsize)                         # sublane pack granularity
    padded_D = _round_up(D, sub)                         # VMEM sublane padding
    padded_R = _round_up(max(R - 1, 1), 8)

    # Per-lane VMEM bytes: double-buffered input + double-buffered (1->8 row)
    # output + a conservative estimate of the f32 kernel intermediates
    # (cast copy + ~4 live (R-1, TILE_B) temporaries).
    per_lane = itemsize * (2 * padded_D + 2 * 8) + 4 * (padded_D + 4 * padded_R + 8)
    budget = 12 * 1024 * 1024
    cap = max(_LANE, (budget // per_lane) // _LANE * _LANE)

    tile_b = min(cap, _round_up(B, _LANE))
    if max_tile_b is not None:
        tile_b = min(tile_b, max(_LANE, _round_up(int(max_tile_b), _LANE)))
    # Guarantee >=2 grid tiles when possible so ("parallel",) shards the batch
    # across v7x's two TensorCores (no-op on v5e/v6e, negligible extra step cost).
    if _round_up(B, _LANE) >= 2 * _LANE:
        tile_b = min(tile_b, _round_up(_cdiv(B, 2), _LANE))
    tile_b = max(_LANE, tile_b)
    num_tiles = _cdiv(B, tile_b)

    # Scoped VMEM: enough for the pipeline + intermediates, capped well under
    # v7x's 64 MiB physical (32 MiB scoped default).
    vmem_limit = int(min(28 * 1024 * 1024,
                         max(16 * 1024 * 1024, 2 * per_lane * tile_b)))

    cost = pl.CostEstimate(
        flops=int(4 * B * n2 * max(n1 - 2, 0) + 4 * B),
        transcendentals=0,
        bytes_accessed=int(B * D * itemsize + B * itemsize),
    )

    out = pl.pallas_call(
        _make_rosenbrock_kernel(n1, n2, a, b),
        out_shape=jax.ShapeDtypeStruct((1, B), xt.dtype),
        grid=(num_tiles,),
        in_specs=[pl.BlockSpec((D, tile_b), lambda i: (0, i))],
        out_specs=pl.BlockSpec((1, tile_b), lambda i: (0, i)),
        compiler_params=pltpu.CompilerParams(
            dimension_semantics=("parallel",),
            vmem_limit_bytes=vmem_limit,
        ),
        cost_estimate=cost,
    )(xt)

    result = out[0, :]                                   # (B,), no trim needed
    return result if dim1 else result[0]


def rosenbrock_ref(x, n1, n2, a=1.0 / 20.0, b=5.0):
    """NumPy reference matching the PyTorch 2-D branch."""
    x = np.asarray(x)
    y = x[:, 0]
    xr = x[:, 1:].reshape(x.shape[0], n2, n1 - 1)
    xx = xr[:, :, 1:]
    xxx = xr[:, :, :-1]
    return -a * (y - 1.0) ** 2 - b * np.sum(np.sum((xx - xxx ** 2) ** 2, -1), -1)


if __name__ == "__main__":
    n1, n2 = 5, 4                       # -> feature dim D = n2*(n1-1)+1 = 17
    D = n2 * (n1 - 1) + 1

    key = jax.random.PRNGKey(0)
    fwd = functools.partial(rosenbrock_forward, n1=n1, n2=n2)

    # Small batch (single partial tile, masked output store).
    B = 8
    x = jax.random.normal(key, (B, D), dtype=jnp.float32)
    out = jax.block_until_ready(fwd(x))
    ref = rosenbrock_ref(np.asarray(x), n1, n2)
    np.testing.assert_allclose(np.asarray(out), ref, rtol=1e-5, atol=1e-5)

    # 1-D input path (unsqueeze/squeeze glue).
    out1d = jax.block_until_ready(fwd(x[0]))
    np.testing.assert_allclose(np.asarray(out1d), ref[0], rtol=1e-5, atol=1e-5)

    # Larger batch with a forced small tile to exercise the multi-tile grid
    # and the un-padded (cdiv) last block.
    B2 = 300
    x2 = jax.random.normal(jax.random.PRNGKey(0), (B2, D), dtype=jnp.float32)
    out2 = jax.block_until_ready(
        rosenbrock_forward(x2, n1, n2, max_tile_b=128))
    ref2 = rosenbrock_ref(np.asarray(x2), n1, n2)
    np.testing.assert_allclose(np.asarray(out2), ref2, rtol=1e-5, atol=1e-5)

    # Feature-major contract: caller supplies (D, B), no wrapper transpose.
    out3 = jax.block_until_ready(
        rosenbrock_forward(x2.T, n1, n2, feature_major=True, max_tile_b=256))
    np.testing.assert_allclose(np.asarray(out3), ref2, rtol=1e-5, atol=1e-5)

    print("KERNEL_OK")
</pallas_src>

<mosaic_0001>
module attributes {stable_mosaic.version = 11 : i64} {
  func.func @kernel(%arg0: i32, %arg1: memref<17x128xf32, #tpu.memory_space<vmem>>, %arg2: memref<1x128xf32, #tpu.memory_space<vmem>>) attributes {dimension_semantics = [#tpu.dimension_semantics<parallel>], iteration_bounds = array<i64: 1>, scalar_prefetch = 0 : i64, scratch_operands = 0 : i64, tpu.core_type = #tpu.core_type<tc>, window_params = [{transform_indices = @transform_0, window_bounds = array<i64: 17, 128>}, {transform_indices = @transform_1, window_bounds = array<i64: 1, 128>}]} {
    %c0 = arith.constant 0 : index
    %c0_0 = arith.constant 0 : index
    %0 = vector.load %arg1[%c0, %c0_0] : memref<17x128xf32, #tpu.memory_space<vmem>>, vector<17x128xf32>
    %1 = vector.extract_strided_slice %0 {offsets = [0, 0], sizes = [1, 128], strides = [1, 1]} : vector<17x128xf32> to vector<1x128xf32>
    %2 = vector.extract_strided_slice %0 {offsets = [1, 0], sizes = [16, 128], strides = [1, 1]} : vector<17x128xf32> to vector<16x128xf32>
    %3 = vector.extract_strided_slice %2 {offsets = [0, 0], sizes = [15, 128], strides = [1, 1]} : vector<16x128xf32> to vector<15x128xf32>
    %4 = vector.extract_strided_slice %2 {offsets = [1, 0], sizes = [15, 128], strides = [1, 1]} : vector<16x128xf32> to vector<15x128xf32>
    %5 = arith.mulf %3, %3 : vector<15x128xf32>
    %6 = arith.subf %4, %5 : vector<15x128xf32>
    %7 = arith.mulf %6, %6 : vector<15x128xf32>
    %8 = tpu.iota {dimensions = array<i32: 0>} : vector<15x128xi32>
    %c4_i32 = arith.constant 4 : i32
    %c0_i32 = arith.constant 0 : i32
    %9 = arith.cmpi eq, %c4_i32, %c0_i32 : i32
    %c1_i32 = arith.constant 1 : i32
    %10 = arith.select %9, %c1_i32, %c4_i32 : i32
    %11 = vector.broadcast %10 : i32 to vector<15x128xi32>
    %12 = arith.remsi %8, %11 : vector<15x128xi32>
    %c0_i32_1 = arith.constant 0 : i32
    %13 = vector.broadcast %c0_i32_1 : i32 to vector<15x128xi32>
    %14 = arith.cmpi ne, %12, %13 : vector<15x128xi32>
    %c0_i32_2 = arith.constant 0 : i32
    %15 = vector.broadcast %c0_i32_2 : i32 to vector<15x128xi32>
    %16 = arith.cmpi slt, %12, %15 : vector<15x128xi32>
    %c0_i32_3 = arith.constant 0 : i32
    %17 = arith.cmpi slt, %10, %c0_i32_3 : i32
    %18 = vector.broadcast %17 : i1 to vector<15x128xi1>
    %19 = vector.broadcast %18 : vector<15x128xi1> to vector<15x128xi1>
    %20 = arith.xori %16, %19 : vector<15x128xi1>
    %21 = arith.andi %20, %14 : vector<15x128xi1>
    %22 = vector.broadcast %10 : i32 to vector<15x128xi32>
    %23 = arith.addi %12, %22 : vector<15x128xi32>
    %24 = arith.select %21, %23, %12 : vector<15x128xi1>, vector<15x128xi32>
    %c3_i32 = arith.constant 3 : i32
    %25 = vector.broadcast %c3_i32 : i32 to vector<15x128xi32>
    %26 = arith.cmpi ne, %24, %25 : vector<15x128xi32>
    %cst = arith.constant 0.000000e+00 : f32
    %27 = vector.broadcast %cst : f32 to vector<15x128xf32>
    %28 = arith.select %26, %7, %27 : vector<15x128xi1>, vector<15x128xf32>
    %cst_4 = arith.constant dense<0.000000e+00> : vector<128xf32>
    %29 = vector.multi_reduction <add>, %28, %cst_4 [0] : vector<15x128xf32> to vector<128xf32>
    %30 = vector.shape_cast %29 : vector<128xf32> to vector<1x128xf32>
    %cst_5 = arith.constant 1.000000e+00 : f32
    %31 = vector.broadcast %cst_5 : f32 to vector<1x128xf32>
    %32 = arith.subf %1, %31 : vector<1x128xf32>
    %cst_6 = arith.constant -5.000000e-02 : f32
    %33 = vector.broadcast %cst_6 : f32 to vector<1x128xf32>
    %34 = arith.mulf %33, %32 : vector<1x128xf32>
    %35 = arith.mulf %34, %32 : vector<1x128xf32>
    %cst_7 = arith.constant 5.000000e+00 : f32
    %36 = vector.broadcast %cst_7 : f32 to vector<1x128xf32>
    %37 = arith.mulf %36, %30 : vector<1x128xf32>
    %38 = arith.subf %35, %37 : vector<1x128xf32>
    %c0_8 = arith.constant 0 : index
    %c0_9 = arith.constant 0 : index
    %39 = vector.load %arg2[%c0_8, %c0_9] : memref<1x128xf32, #tpu.memory_space<vmem>>, vector<1x128xf32>
    tpu.vector_store %arg2[%c0_8, %c0_9], %38 {strides = array<i32>} : memref<1x128xf32, #tpu.memory_space<vmem>>, vector<1x128xf32>,
    return
  }
  func.func @transform_0(%arg0: i32) -> (i32, i32) {
    %c0_i32 = arith.constant 0 : i32
    %c0_i32_0 = arith.constant 0 : i32
    return %c0_i32, %arg0 : i32, i32
  }
  func.func @transform_1(%arg0: i32) -> (i32, i32) {
    %c0_i32 = arith.constant 0 : i32
    %c0_i32_0 = arith.constant 0 : i32
    return %c0_i32, %arg0 : i32, i32
  }
}

</mosaic_0001>

<llo_original>
// kernel: tpu_custom_call.1
$region0: #{tpu_custom_call.1}
  #allocation0 [shape = 'u32[]', space=smem, size = 0x4, offset = 0x4, fixed_abs, tag = 'smem constant byte address 0x4 - core index']
  #allocation1 [shape = 'u32[144,128]{1,0:T(1,128)}', space=vmem, size = 0x12000, scoped, tag = 'internal scratch']
  %s0 = inlined_call_operand.vmem [shape: f32[17,8], index: 0, kind: input, shape index: {}]
  %s1 = inlined_call_operand.hbm [shape: f32[1,8], index: 1, kind: output, shape index: {}]
  %s2 = sld [smem:[#allocation0]]
  $region14: #{tpu_custom_call.1} parent=0
    _
  %s4 = ssub.s32 1, %s2
  %s5 = scalar_select 0, %s4, %s2
  $region1: #{tpu_custom_call.1} parent=0
    #allocation2 [shape = 'u8[512]{0}', space=vmem, size = 0x400, scoped, tag = 'output window, operand 0, single buffered']
    #allocation3 [shape = 's32[1]{0}', space=sflag, size = 0x4, scoped, tag = 'scoped memory for tpu_custom_call.1']
    %6 = vsyncpa [#allocation3], 0
    // Predicated region
    $region2: #{tpu_custom_call.1} parent=1 // pred_check
      _
    $region3: #{tpu_custom_call.1} parent=1 // pred_check_branch
      %8 = sbr.rel (0) target = $region5
    $region4: #{tpu_custom_call.1} parent=1 // pred_region
      _
    $region5: #{tpu_custom_call.1} parent=1 // pred_fallthru
      _
    %v9 = vld [vmem:[%s0] sm:$0xff]
    %v10 = vld [vmem:[%s0 + $0x8] sm:$0xff]
    %v11 = vld [vmem:[%s0 + $0x10] sm:$0x1]
    %v12 = vmul.f32 %v9, %v9
    %v13 = vmul.f32 %v10, %v10
    %vm16 = vcmask 1040384
    %v17 = vrot.slane %v12, 7
    %v18 = vrot.slane %v13, 7
    %v19 = vsel %vm16, %v17, %v18
    %v23 = vsub.f32 %v9, %v17
    %v24 = vsub.f32 %v10, %v19
    %v25 = vsub.f32 %v11, %v18
    %v26 = vmul.f32 %v23, %v23
    %v27 = vmul.f32 %v24, %v24
    %v28 = vmul.f32 %v25, %v25
    %v29 = vlaneseq
    %v30 = vshrl.u32 %v29, 7
    %v31 = vadd.s32 %v30, 8
    %vm32 = vcmp.lt.s32.totalorder %v30, 0
    %v33 = vsub.s32 0, %v30
    %v34 = vsel %vm32, %v33, %v30
    %v35 = vshrl.u32 %v34, 2
    %v36 = vand.u32 %v34, 3
    %v37 = vsub.s32 0, %v36
    %v38 = vsel %vm32, %v37, %v36
    %vm39 = vcmp.lt.s32.totalorder %v31, 0
    %v40 = vsub.s32 0, %v31
    %v41 = vsel %vm39, %v40, %v31
    %v42 = vshrl.u32 %v41, 2
    %v43 = vand.u32 %v41, 3
    %v44 = vsub.s32 0, %v43
    %v45 = vsel %vm39, %v44, %v43
    %vm46 = vcmp.ne.s32.totalorder %v38, 0
    %vm47 = vcmp.ne.s32.totalorder %v45, 0
    %vm48 = vcmp.lt.s32.totalorder %v38, 0
    %vm49 = vcmp.lt.s32.totalorder %v45, 0
    %vm50 = vmand %vm48, %vm46
    %vm51 = vmand %vm49, %vm47
    %v52 = vadd.s32 %v38, 4
    %v53 = vadd.s32 %v45, 4
    %v54 = vsel %vm50, %v52, %v38
    %v55 = vsel %vm51, %v53, %v45
    %vm56 = vcmp.ne.s32.totalorder %v54, 3
    %vm57 = vcmp.ne.s32.totalorder %v55, 3
    %vm61 = vcmask 1045504
    %v62 = vrot.slane %v26, 2
    %v63 = vrot.slane %v27, 2
    %v64 = vsel %vm61, %v62, %v63
    %v65 = vrot.slane %v28, 2
    %v66 = vsel %vm61, %v63, %v65
    %v69 = vsel %vm56, %v64, 0.0
    %v70 = vsel %vm57, %v66, 0.0
    %vm71 = vcmask 1046528
    %v72 = vsel %vm71, %v70, 0.0
    %v73 = vadd.f32 %v69, %v72
    %v74 = vrot.slane %v73, 4
    %v75 = vadd.f32 %v73, %v74
    %v76 = vrot.slane %v75, 2
    %v77 = vadd.f32 %v75, %v76
    %v78 = vrot.slane %v77, 1
    %v79 = vadd.f32 %v77, %v78
    %v80 = vsub.f32 %v9, 1.0
    %v81 = vmul.f32 %v80, -0.05
    %v82 = vmul.f32 %v81, %v80
    %v83 = vmul.f32 %v79, 5.0
    %v84 = vsub.f32 %v82, %v83
    %85 = vst [vmem:[#allocation2] sm:$0x1] %v84
    // Predicated region
    $region6: #{tpu_custom_call.1} parent=1 // pred_check
      _
    $region7: #{tpu_custom_call.1} parent=1 // pred_check_branch
      %87 = sbr.rel (0) target = $region9
    $region8: #{tpu_custom_call.1} parent=1 // pred_region
      %s89 = ssub.s32 16, 16
      %90 = vsyncadd [#allocation3], %s89
      %s92 = sshll.u32 [#allocation2], 4
      %s93 = int_to_ptr.vmem [resolvable:$true] %s92
      %95 = dma.vmem_to_hbm [thread:$0]  %s93, 16, %s1, [#allocation3]
    $region9: #{tpu_custom_call.1} parent=1 // pred_fallthru
      _
    // Predicated region
    $region10: #{tpu_custom_call.1} parent=1 // pred_check
      _
    $region11: #{tpu_custom_call.1} parent=1 // pred_check_branch
      %97 = sbr.rel (0) target = $region13
    $region12: #{tpu_custom_call.1} parent=1 // pred_region
      %98 = dma.done [#allocation3], 16
    $region13: #{tpu_custom_call.1} parent=1 // pred_fallthru
      _
    %99 = vsyncpa [#allocation3], 1

</llo_original>
